<compile_context>
chip_gen: v6e
topology: v6e:2x2x1
jax: 0.10.0
libtpu: 0.0.40
codegen_flags: <defaults>
</compile_context>

<pallas_src>
import jax
import jax.numpy as jnp
from jax.experimental import pallas as pl
from jax.experimental.pallas import tpu as pltpu


def _cdiv(a, b):
    return -(-a // b)


def _round_up(n, m):
    return ((n + m - 1) // m) * m


def _dual_output_kernel(x_ref, w1_ref, b1_ref, w2_ref, b2_ref,
                        wa_ref, ba_ref, wr_ref, br_ref,
                        attack_ref, risk_ref):
    # x tile arrives as f32; cast to bf16 on the VPU (free filler under the DMA).
    x = x_ref[...].astype(jnp.bfloat16)

    # l1 + ReLU (f32 accumulate / epilogue; dropout is identity at inference).
    h1 = jnp.dot(x, w1_ref[...], preferred_element_type=jnp.float32) + b1_ref[...]
    h1 = jnp.maximum(h1, 0.0).astype(jnp.bfloat16)

    # l2 + ReLU
    h2 = jnp.dot(h1, w2_ref[...], preferred_element_type=jnp.float32) + b2_ref[...]
    h2 = jnp.maximum(h2, 0.0).astype(jnp.bfloat16)

    # Two narrow heads, written directly (no padded 128-wide slab).
    attack_ref[...] = (
        jnp.dot(h2, wa_ref[...], preferred_element_type=jnp.float32) + ba_ref[...]
    )
    risk_ref[...] = (
        jnp.dot(h2, wr_ref[...], preferred_element_type=jnp.float32) + br_ref[...]
    )


def _choose_batch_tile(B, tile_b):
    """Batch tile: multiple of 16 (>=8), derived from B so the ragged tail is
    at most one partial tile, and split into >=2 grid steps when there is
    enough work so both v7x TensorCores get a share of the batch."""
    B8 = _round_up(B, 8)
    n_steps = max(1, _cdiv(B8, tile_b))
    if n_steps == 1 and B8 >= 256:
        n_steps = 2
    tb = _round_up(_cdiv(B8, n_steps), 16)
    return min(tb, B8)


def dual_output_nn_forward(x, params, *, tile_b=1024):
    """x: [B, input_size] float32. params: dict from init_params()."""
    B, F = x.shape
    w1, b1 = params["w1"], params["b1"]
    w2, b2 = params["w2"], params["b2"]
    wa, ba = params["wa"], params["ba"]
    wr, br = params["wr"], params["br"]
    H1 = w1.shape[1]
    H2 = w2.shape[1]
    Na = wa.shape[1]
    Nr = wr.shape[1]

    TB = _choose_batch_tile(B, tile_b)
    grid = (_cdiv(B, TB),)
    # No padding of B: the last (possibly ragged) tile's OOB rows are clamped
    # on read and skipped on writeback by the TPU Pallas pipeline.

    weight_bytes = sum(
        int(a.size) * int(a.dtype.itemsize)
        for a in (w1, b1, w2, b2, wa, ba, wr, br)
    )
    rows = grid[0] * TB
    cost = pl.CostEstimate(
        flops=2 * rows * (F * H1 + H1 * H2 + H2 * (Na + Nr)),
        transcendentals=0,
        bytes_accessed=B * F * 4 + weight_bytes + B * (Na + Nr) * 4,
    )

    attack_out, risk_out = pl.pallas_call(
        _dual_output_kernel,
        out_shape=(
            jax.ShapeDtypeStruct((B, Na), jnp.float32),
            jax.ShapeDtypeStruct((B, Nr), jnp.float32),
        ),
        grid=grid,
        in_specs=[
            pl.BlockSpec((TB, F), lambda i: (i, 0)),   # x: streamed per batch tile
            pl.BlockSpec((F, H1), lambda i: (0, 0)),   # weights/biases: resident
            pl.BlockSpec((1, H1), lambda i: (0, 0)),
            pl.BlockSpec((H1, H2), lambda i: (0, 0)),
            pl.BlockSpec((1, H2), lambda i: (0, 0)),
            pl.BlockSpec((H2, Na), lambda i: (0, 0)),
            pl.BlockSpec((1, Na), lambda i: (0, 0)),
            pl.BlockSpec((H2, Nr), lambda i: (0, 0)),
            pl.BlockSpec((1, Nr), lambda i: (0, 0)),
        ],
        out_specs=(
            pl.BlockSpec((TB, Na), lambda i: (i, 0)),
            pl.BlockSpec((TB, Nr), lambda i: (i, 0)),
        ),
        compiler_params=pltpu.CompilerParams(
            dimension_semantics=("parallel",),
        ),
        cost_estimate=cost,
    )(x, w1, b1, w2, b2, wa, ba, wr, br)

    return attack_out, risk_out


def init_params(key, input_size, hidden_size, hidden_size_2,
                num_classes_attack, num_classes_risk):
    """nn.Linear-style init. Weights stored [in, out] (PyTorch W.T) in bf16,
    biases [1, out] in f32."""
    def linear(k, fan_in, fan_out):
        kw, kb = jax.random.split(k)
        bound = 1.0 / (fan_in ** 0.5)
        w = jax.random.uniform(kw, (fan_in, fan_out), jnp.float32, -bound, bound)
        b = jax.random.uniform(kb, (1, fan_out), jnp.float32, -bound, bound)
        return w.astype(jnp.bfloat16), b

    k1, k2, k3, k4 = jax.random.split(key, 4)
    w1, b1 = linear(k1, input_size, hidden_size)
    w2, b2 = linear(k2, hidden_size, hidden_size_2)
    wa, ba = linear(k3, hidden_size_2, num_classes_attack)
    wr, br = linear(k4, hidden_size_2, num_classes_risk)

    return {
        "w1": w1, "b1": b1,
        "w2": w2, "b2": b2,
        "wa": wa, "ba": ba,
        "wr": wr, "br": br,
    }


def _reference_forward(x, p):
    """Pure-JAX reference mirroring the kernel's bf16-matmul / f32-accumulate math."""
    xb = x.astype(jnp.bfloat16)
    h1 = jnp.maximum(
        jnp.dot(xb, p["w1"], preferred_element_type=jnp.float32) + p["b1"], 0.0
    ).astype(jnp.bfloat16)
    h2 = jnp.maximum(
        jnp.dot(h1, p["w2"], preferred_element_type=jnp.float32) + p["b2"], 0.0
    ).astype(jnp.bfloat16)
    attack = jnp.dot(h2, p["wa"], preferred_element_type=jnp.float32) + p["ba"]
    risk = jnp.dot(h2, p["wr"], preferred_element_type=jnp.float32) + p["br"]
    return attack, risk


if __name__ == "__main__":
    # Small shapes consistent with the module's forward.
    batch = 8
    input_size = 32
    hidden_size = 64
    hidden_size_2 = 32
    num_classes_attack = 8
    num_classes_risk = 4

    key = jax.random.PRNGKey(0)
    kx, kp = jax.random.split(key)
    x = jax.random.normal(kx, (batch, input_size), dtype=jnp.float32)
    params = init_params(kp, input_size, hidden_size, hidden_size_2,
                         num_classes_attack, num_classes_risk)

    attack_out, risk_out = dual_output_nn_forward(x, params)
    jax.block_until_ready((attack_out, risk_out))

    ref_attack, ref_risk = _reference_forward(x, params)
    assert attack_out.shape == (batch, num_classes_attack)
    assert risk_out.shape == (batch, num_classes_risk)
    assert jnp.allclose(attack_out, ref_attack, atol=1e-2, rtol=1e-2), (
        float(jnp.max(jnp.abs(attack_out - ref_attack))))
    assert jnp.allclose(risk_out, ref_risk, atol=1e-2, rtol=1e-2), (
        float(jnp.max(jnp.abs(risk_out - ref_risk))))

    print("KERNEL_OK")
</pallas_src>

<mosaic_0001>
module attributes {stable_mosaic.version = 11 : i64} {
  func.func @_dual_output_kernel(%arg0: i32, %arg1: memref<8x32xf32, #tpu.memory_space<vmem>>, %arg2: memref<32x64xbf16, #tpu.memory_space<vmem>>, %arg3: memref<1x64xf32, #tpu.memory_space<vmem>>, %arg4: memref<64x32xbf16, #tpu.memory_space<vmem>>, %arg5: memref<1x32xf32, #tpu.memory_space<vmem>>, %arg6: memref<32x8xbf16, #tpu.memory_space<vmem>>, %arg7: memref<1x8xf32, #tpu.memory_space<vmem>>, %arg8: memref<32x4xbf16, #tpu.memory_space<vmem>>, %arg9: memref<1x4xf32, #tpu.memory_space<vmem>>, %arg10: memref<8x8xf32, #tpu.memory_space<vmem>>, %arg11: memref<8x4xf32, #tpu.memory_space<vmem>>) attributes {dimension_semantics = [#tpu.dimension_semantics<parallel>], iteration_bounds = array<i64: 1>, scalar_prefetch = 0 : i64, scratch_operands = 0 : i64, tpu.core_type = #tpu.core_type<tc>, window_params = [{transform_indices = @transform_0, window_bounds = array<i64: 8, 32>}, {pipeline_mode = #tpu.pipeline_mode<synchronous>, transform_indices = @transform_1, window_bounds = array<i64: 32, 64>}, {pipeline_mode = #tpu.pipeline_mode<synchronous>, transform_indices = @transform_2, window_bounds = array<i64: 1, 64>}, {pipeline_mode = #tpu.pipeline_mode<synchronous>, transform_indices = @transform_3, window_bounds = array<i64: 64, 32>}, {pipeline_mode = #tpu.pipeline_mode<synchronous>, transform_indices = @transform_4, window_bounds = array<i64: 1, 32>}, {pipeline_mode = #tpu.pipeline_mode<synchronous>, transform_indices = @transform_5, window_bounds = array<i64: 32, 8>}, {pipeline_mode = #tpu.pipeline_mode<synchronous>, transform_indices = @transform_6, window_bounds = array<i64: 1, 8>}, {pipeline_mode = #tpu.pipeline_mode<synchronous>, transform_indices = @transform_7, window_bounds = array<i64: 32, 4>}, {pipeline_mode = #tpu.pipeline_mode<synchronous>, transform_indices = @transform_8, window_bounds = array<i64: 1, 4>}, {transform_indices = @transform_9, window_bounds = array<i64: 8, 8>}, {transform_indices = @transform_10, window_bounds = array<i64: 8, 4>}]} {
    %c0 = arith.constant 0 : index
    %c0_0 = arith.constant 0 : index
    %0 = vector.load %arg1[%c0, %c0_0] : memref<8x32xf32, #tpu.memory_space<vmem>>, vector<8x32xf32>
    %1 = arith.truncf %0 : vector<8x32xf32> to vector<8x32xbf16>
    %c0_1 = arith.constant 0 : index
    %c0_2 = arith.constant 0 : index
    %2 = vector.load %arg2[%c0_1, %c0_2] : memref<32x64xbf16, #tpu.memory_space<vmem>>, vector<32x64xbf16>
    %cst = arith.constant dense<0.000000e+00> : vector<8x64xf32>
    %3 = tpu.matmul %1, %2, %cst {dimension_numbers = #tpu.dot_dimension_numbers<[1], [0], [0], [1], [0, 0, 1, 1], [], []>} : vector<8x32xbf16>, vector<32x64xbf16>, vector<8x64xf32> -> vector<8x64xf32>
    %c0_3 = arith.constant 0 : index
    %c0_4 = arith.constant 0 : index
    %4 = vector.load %arg3[%c0_3, %c0_4] : memref<1x64xf32, #tpu.memory_space<vmem>>, vector<1x64xf32>
    %5 = vector.broadcast %4 : vector<1x64xf32> to vector<8x64xf32>
    %6 = arith.addf %3, %5 : vector<8x64xf32>
    %cst_5 = arith.constant 0.000000e+00 : f32
    %7 = vector.broadcast %cst_5 : f32 to vector<8x64xf32>
    %8 = arith.maximumf %6, %7 : vector<8x64xf32>
    %9 = arith.truncf %8 : vector<8x64xf32> to vector<8x64xbf16>
    %c0_6 = arith.constant 0 : index
    %c0_7 = arith.constant 0 : index
    %10 = vector.load %arg4[%c0_6, %c0_7] : memref<64x32xbf16, #tpu.memory_space<vmem>>, vector<64x32xbf16>
    %cst_8 = arith.constant dense<0.000000e+00> : vector<8x32xf32>
    %11 = tpu.matmul %9, %10, %cst_8 {dimension_numbers = #tpu.dot_dimension_numbers<[1], [0], [0], [1], [0, 0, 1, 1], [], []>} : vector<8x64xbf16>, vector<64x32xbf16>, vector<8x32xf32> -> vector<8x32xf32>
    %c0_9 = arith.constant 0 : index
    %c0_10 = arith.constant 0 : index
    %12 = vector.load %arg5[%c0_9, %c0_10] : memref<1x32xf32, #tpu.memory_space<vmem>>, vector<1x32xf32>
    %13 = vector.broadcast %12 : vector<1x32xf32> to vector<8x32xf32>
    %14 = arith.addf %11, %13 : vector<8x32xf32>
    %cst_11 = arith.constant 0.000000e+00 : f32
    %15 = vector.broadcast %cst_11 : f32 to vector<8x32xf32>
    %16 = arith.maximumf %14, %15 : vector<8x32xf32>
    %17 = arith.truncf %16 : vector<8x32xf32> to vector<8x32xbf16>
    %c0_12 = arith.constant 0 : index
    %c0_13 = arith.constant 0 : index
    %18 = vector.load %arg6[%c0_12, %c0_13] : memref<32x8xbf16, #tpu.memory_space<vmem>>, vector<32x8xbf16>
    %cst_14 = arith.constant dense<0.000000e+00> : vector<8x8xf32>
    %19 = tpu.matmul %17, %18, %cst_14 {dimension_numbers = #tpu.dot_dimension_numbers<[1], [0], [0], [1], [0, 0, 1, 1], [], []>} : vector<8x32xbf16>, vector<32x8xbf16>, vector<8x8xf32> -> vector<8x8xf32>
    %c0_15 = arith.constant 0 : index
    %c0_16 = arith.constant 0 : index
    %20 = vector.load %arg7[%c0_15, %c0_16] : memref<1x8xf32, #tpu.memory_space<vmem>>, vector<1x8xf32>
    %21 = vector.broadcast %20 : vector<1x8xf32> to vector<8x8xf32>
    %22 = arith.addf %19, %21 : vector<8x8xf32>
    %c0_17 = arith.constant 0 : index
    %c0_18 = arith.constant 0 : index
    %23 = vector.load %arg10[%c0_17, %c0_18] : memref<8x8xf32, #tpu.memory_space<vmem>>, vector<8x8xf32>
    tpu.vector_store %arg10[%c0_17, %c0_18], %22 {strides = array<i32>} : memref<8x8xf32, #tpu.memory_space<vmem>>, vector<8x8xf32>,
    %c0_19 = arith.constant 0 : index
    %c0_20 = arith.constant 0 : index
    %24 = vector.load %arg8[%c0_19, %c0_20] : memref<32x4xbf16, #tpu.memory_space<vmem>>, vector<32x4xbf16>
    %cst_21 = arith.constant dense<0.000000e+00> : vector<8x4xf32>
    %25 = tpu.matmul %17, %24, %cst_21 {dimension_numbers = #tpu.dot_dimension_numbers<[1], [0], [0], [1], [0, 0, 1, 1], [], []>} : vector<8x32xbf16>, vector<32x4xbf16>, vector<8x4xf32> -> vector<8x4xf32>
    %c0_22 = arith.constant 0 : index
    %c0_23 = arith.constant 0 : index
    %26 = vector.load %arg9[%c0_22, %c0_23] : memref<1x4xf32, #tpu.memory_space<vmem>>, vector<1x4xf32>
    %27 = vector.broadcast %26 : vector<1x4xf32> to vector<8x4xf32>
    %28 = arith.addf %25, %27 : vector<8x4xf32>
    %c0_24 = arith.constant 0 : index
    %c0_25 = arith.constant 0 : index
    %29 = vector.load %arg11[%c0_24, %c0_25] : memref<8x4xf32, #tpu.memory_space<vmem>>, vector<8x4xf32>
    tpu.vector_store %arg11[%c0_24, %c0_25], %28 {strides = array<i32>} : memref<8x4xf32, #tpu.memory_space<vmem>>, vector<8x4xf32>,
    return
  }
  func.func @transform_0(%arg0: i32) -> (i32, i32) {
    %c0_i32 = arith.constant 0 : i32
    %c0_i32_0 = arith.constant 0 : i32
    return %arg0, %c0_i32 : i32, i32
  }
  func.func @transform_1(%arg0: i32) -> (i32, i32) {
    %c0_i32 = arith.constant 0 : i32
    %c0_i32_0 = arith.constant 0 : i32
    %c0_i32_1 = arith.constant 0 : i32
    return %c0_i32, %c0_i32_0 : i32, i32
  }
  func.func @transform_2(%arg0: i32) -> (i32, i32) {
    %c0_i32 = arith.constant 0 : i32
    %c0_i32_0 = arith.constant 0 : i32
    %c0_i32_1 = arith.constant 0 : i32
    return %c0_i32, %c0_i32_0 : i32, i32
  }
  func.func @transform_3(%arg0: i32) -> (i32, i32) {
    %c0_i32 = arith.constant 0 : i32
    %c0_i32_0 = arith.constant 0 : i32
    %c0_i32_1 = arith.constant 0 : i32
    return %c0_i32, %c0_i32_0 : i32, i32
  }
  func.func @transform_4(%arg0: i32) -> (i32, i32) {
    %c0_i32 = arith.constant 0 : i32
    %c0_i32_0 = arith.constant 0 : i32
    %c0_i32_1 = arith.constant 0 : i32
    return %c0_i32, %c0_i32_0 : i32, i32
  }
  func.func @transform_5(%arg0: i32) -> (i32, i32) {
    %c0_i32 = arith.constant 0 : i32
    %c0_i32_0 = arith.constant 0 : i32
    %c0_i32_1 = arith.constant 0 : i32
    return %c0_i32, %c0_i32_0 : i32, i32
  }
  func.func @transform_6(%arg0: i32) -> (i32, i32) {
    %c0_i32 = arith.constant 0 : i32
    %c0_i32_0 = arith.constant 0 : i32
    %c0_i32_1 = arith.constant 0 : i32
    return %c0_i32, %c0_i32_0 : i32, i32
  }
  func.func @transform_7(%arg0: i32) -> (i32, i32) {
    %c0_i32 = arith.constant 0 : i32
    %c0_i32_0 = arith.constant 0 : i32
    %c0_i32_1 = arith.constant 0 : i32
    return %c0_i32, %c0_i32_0 : i32, i32
  }
  func.func @transform_8(%arg0: i32) -> (i32, i32) {
    %c0_i32 = arith.constant 0 : i32
    %c0_i32_0 = arith.constant 0 : i32
    %c0_i32_1 = arith.constant 0 : i32
    return %c0_i32, %c0_i32_0 : i32, i32
  }
  func.func @transform_9(%arg0: i32) -> (i32, i32) {
    %c0_i32 = arith.constant 0 : i32
    %c0_i32_0 = arith.constant 0 : i32
    return %arg0, %c0_i32 : i32, i32
  }
  func.func @transform_10(%arg0: i32) -> (i32, i32) {
    %c0_i32 = arith.constant 0 : i32
    %c0_i32_0 = arith.constant 0 : i32
    return %arg0, %c0_i32 : i32, i32
  }
}

</mosaic_0001>

<llo_original>
// kernel: tpu_custom_call.1
$region0: #{tpu_custom_call.1}
  #allocation0 [shape = 'u32[]', space=smem, size = 0x4, offset = 0x4, fixed_abs, tag = 'smem constant byte address 0x4 - core index']
  #allocation1 [shape = 'u32[144,128]{1,0:T(1,128)}', space=vmem, size = 0x12000, scoped, tag = 'internal scratch']
  %s0 = inlined_call_operand.vmem [shape: f32[8,32], index: 0, kind: input, shape index: {}]
  %s1 = inlined_call_operand.vmem [shape: bf16[32,64], index: 1, kind: input, shape index: {}]
  %s2 = inlined_call_operand.vmem [shape: f32[1,64], index: 2, kind: input, shape index: {}]
  %s3 = inlined_call_operand.vmem [shape: bf16[64,32], index: 3, kind: input, shape index: {}]
  %s4 = inlined_call_operand.vmem [shape: f32[1,32], index: 4, kind: input, shape index: {}]
  %s5 = inlined_call_operand.vmem [shape: bf16[32,8], index: 5, kind: input, shape index: {}]
  %s6 = inlined_call_operand.vmem [shape: f32[1,8], index: 6, kind: input, shape index: {}]
  %s7 = inlined_call_operand.vmem [shape: bf16[32,4], index: 7, kind: input, shape index: {}]
  %s8 = inlined_call_operand.vmem [shape: f32[1,4], index: 8, kind: input, shape index: {}]
  %s9 = inlined_call_operand.hbm [shape: f32[8,8], index: 9, kind: output, shape index: {0}]
  %s10 = inlined_call_operand.vmem [shape: f32[8,4], index: 10, kind: output, shape index: {1}]
  %11 = xla_tuple %s9, %s10
  %s12 = sld [smem:[#allocation0]]
  $region54: #{tpu_custom_call.1} parent=0
    _
  %s14 = ssub.s32 1, %s12
  %s15 = scalar_select 0, %s14, %s12
  $region1: #{tpu_custom_call.1} parent=0
    #allocation2 [shape = 'u8[4096]{0}', space=vmem, size = 0x1000, scoped, tag = 'output window, operand 0, single buffered']
    #allocation3 [shape = 's32[1]{0}', space=sflag, size = 0x4, scoped, tag = 'scoped memory for tpu_custom_call.1']
    %16 = vsyncpa [#allocation3], 0
    // Predicated region
    $region2: #{tpu_custom_call.1} parent=1 // pred_check
      _
    $region3: #{tpu_custom_call.1} parent=1 // pred_check_branch
      %18 = sbr.rel (0) target = $region5
    $region4: #{tpu_custom_call.1} parent=1 // pred_region
      _
    $region5: #{tpu_custom_call.1} parent=1 // pred_fallthru
      _
    // Predicated region
    $region6: #{tpu_custom_call.1} parent=1 // pred_check
      _
    $region7: #{tpu_custom_call.1} parent=1 // pred_check_branch
      %20 = sbr.rel (0) target = $region9
    $region8: #{tpu_custom_call.1} parent=1 // pred_region
      _
    $region9: #{tpu_custom_call.1} parent=1 // pred_fallthru
      _
    // Predicated region
    $region10: #{tpu_custom_call.1} parent=1 // pred_check
      _
    $region11: #{tpu_custom_call.1} parent=1 // pred_check_branch
      %22 = sbr.rel (0) target = $region13
    $region12: #{tpu_custom_call.1} parent=1 // pred_region
      _
    $region13: #{tpu_custom_call.1} parent=1 // pred_fallthru
      _
    // Predicated region
    $region14: #{tpu_custom_call.1} parent=1 // pred_check
      _
    $region15: #{tpu_custom_call.1} parent=1 // pred_check_branch
      %24 = sbr.rel (0) target = $region17
    $region16: #{tpu_custom_call.1} parent=1 // pred_region
      _
    $region17: #{tpu_custom_call.1} parent=1 // pred_fallthru
      _
    // Predicated region
    $region18: #{tpu_custom_call.1} parent=1 // pred_check
      _
    $region19: #{tpu_custom_call.1} parent=1 // pred_check_branch
      %26 = sbr.rel (0) target = $region21
    $region20: #{tpu_custom_call.1} parent=1 // pred_region
      _
    $region21: #{tpu_custom_call.1} parent=1 // pred_fallthru
      _
    // Predicated region
    $region22: #{tpu_custom_call.1} parent=1 // pred_check
      _
    $region23: #{tpu_custom_call.1} parent=1 // pred_check_branch
      %28 = sbr.rel (0) target = $region25
    $region24: #{tpu_custom_call.1} parent=1 // pred_region
      _
    $region25: #{tpu_custom_call.1} parent=1 // pred_fallthru
      _
    // Predicated region
    $region26: #{tpu_custom_call.1} parent=1 // pred_check
      _
    $region27: #{tpu_custom_call.1} parent=1 // pred_check_branch
      %30 = sbr.rel (0) target = $region29
    $region28: #{tpu_custom_call.1} parent=1 // pred_region
      _
    $region29: #{tpu_custom_call.1} parent=1 // pred_fallthru
      _
    // Predicated region
    $region30: #{tpu_custom_call.1} parent=1 // pred_check
      _
    $region31: #{tpu_custom_call.1} parent=1 // pred_check_branch
      %32 = sbr.rel (0) target = $region33
    $region32: #{tpu_custom_call.1} parent=1 // pred_region
      _
    $region33: #{tpu_custom_call.1} parent=1 // pred_fallthru
      _
    // Predicated region
    $region34: #{tpu_custom_call.1} parent=1 // pred_check
      _
    $region35: #{tpu_custom_call.1} parent=1 // pred_check_branch
      %34 = sbr.rel (0) target = $region37
    $region36: #{tpu_custom_call.1} parent=1 // pred_region
      _
    $region37: #{tpu_custom_call.1} parent=1 // pred_fallthru
      _
    %v36 = vld [vmem:[%s0] sm:$0xff]
    %v37 = vpack.c.bf16 %v36, %v36
    %v38 = vld [vmem:[%s1] sm:$0xf]
    %v39 = vld [vmem:[%s1 + $0x4] sm:$0xf]
    %v40 = vld [vmem:[%s1 + $0x8] sm:$0xf]
    %v41 = vld [vmem:[%s1 + $0xc] sm:$0xf]
    %v42 = vld [vmem:[%s2] sm:$0x1]
    %v44 = vlaneseq
    %v45 = vshrl.u32 %v44, 7
    %v46 = vsub.s32 0, %v45
    %v47 = vrot.slane %v42, %v46
    %v53 = vunpack.c.l.b16 %v38
    %v54 = vunpack.c.l.b16 %v39
    %v55 = vunpack.c.l.b16 %v40
    %v56 = vunpack.c.l.b16 %v41
    %v57 = vpack.c.b16 %v54, %v53
    %v58 = vpack.c.b16 %v56, %v55
    %vm61 = vcmask 261120
    %v63 = vsel %vm61, %v37, 0
    %65 = vmatprep.subr.bf16.mxu0 0
    %66 = vmatpush1.bf16.msra.mxu0 0
    %67 = vmatprep.subr.bf16.mxu0 0
    %68 = vmatpush1.bf16.msra.mxu0 0
    %69 = vmatprep.subr.bf16.mxu0 0
    %70 = vmatpush1.bf16.msra.mxu0 0
    %71 = vmatprep.subr.bf16.mxu0 0
    %72 = vmatpush1.bf16.msra.mxu0 0
    %73 = vmatprep.subr.bf16.mxu0 0
    %74 = vmatpush1.bf16.msra.mxu0 0
    %75 = vmatprep.subr.bf16.mxu0 0
    %76 = vmatpush1.bf16.msra.mxu0 0
    %77 = vmatprep.subr.bf16.mxu0 0
    %78 = vmatpush1.bf16.msra.mxu0 %v58
    %79 = vmatprep.subr.bf16.mxu0 0
    %80 = vmatpush1.bf16.msra.mxu0 %v57
    %81 = vmatprep.subr.bf16.mxu0 0
    %82 = vmatpush2.bf16.msra.mxu0 0
    %83 = vmatprep.subr.bf16.mxu0 0
    %84 = vmatpush2.bf16.msra.mxu0 0
    %85 = vmatprep.subr.bf16.mxu0 0
    %86 = vmatpush2.bf16.msra.mxu0 0
    %87 = vmatprep.subr.bf16.mxu0 0
    %88 = vmatpush2.bf16.msra.mxu0 0
    %89 = vmatprep.subr.bf16.mxu0 0
    %90 = vmatpush2.bf16.msra.mxu0 0
    %91 = vmatprep.subr.bf16.mxu0 0
    %92 = vmatpush2.bf16.msra.mxu0 0
    %93 = vmatprep.subr.bf16.mxu0 0
    %94 = vmatpush2.bf16.msra.mxu0 0
    %95 = vmatprep.subr.bf16.mxu0 0
    %96 = vmatpush2.bf16.msra.mxu0 0
    %97 = vmatprep.mubr.bf16.mxu0 0
    %98 = vmatmul.mubr.bf16.gmra.mxu0 %v63
    %v99 = vpop.f32.mrf.mxu0
    %v100 = vadd.f32 %v47, %v99
    %v101 = vpop.f32.mrf.mxu0
    %v102 = vpop.f32.mrf.mxu0
    %v103 = vpop.f32.mrf.mxu0
    %104 = vdwg.mxu0
    %v105 = vmax.f32 %v100, 0.0
    %v106 = vpack.c.bf16 %v105, %v105
    %v107 = vld [vmem:[%s3] sm:$0xf]
    %v108 = vld [vmem:[%s3 + $0x4] sm:$0xf]
    %v109 = vld [vmem:[%s3 + $0x8] sm:$0xf]
    %v110 = vld [vmem:[%s3 + $0xc] sm:$0xf]
    %v111 = vld [vmem:[%s3 + $0x10] sm:$0xf]
    %v112 = vld [vmem:[%s3 + $0x14] sm:$0xf]
    %v113 = vld [vmem:[%s3 + $0x18] sm:$0xf]
    %v114 = vld [vmem:[%s3 + $0x1c] sm:$0xf]
    %v115 = vld [vmem:[%s4] sm:$0x1]
    %v117 = vlaneseq
    %v118 = vshrl.u32 %v117, 7
    %v119 = vsub.s32 0, %v118
    %v120 = vrot.slane %v115, %v119
    %v130 = vunpack.c.l.b16 %v107
    %v131 = vunpack.c.l.b16 %v108
    %v132 = vunpack.c.l.b16 %v109
    %v133 = vunpack.c.l.b16 %v110
    %v134 = vunpack.c.l.b16 %v111
    %v135 = vunpack.c.l.b16 %v112
    %v136 = vunpack.c.l.b16 %v113
    %v137 = vunpack.c.l.b16 %v114
    %v138 = vpack.c.b16 %v131, %v130
    %v139 = vpack.c.b16 %v133, %v132
    %v140 = vpack.c.b16 %v135, %v134
    %v141 = vpack.c.b16 %v137, %v136
    %vm146 = vcmask 523264
    %v148 = vsel %vm146, %v106, 0
    %150 = vmatprep.subr.bf16.mxu0 0
    %151 = vmatpush1.bf16.msra.mxu0 0
    %152 = vmatprep.subr.bf16.mxu0 0
    %153 = vmatpush1.bf16.msra.mxu0 0
    %154 = vmatprep.subr.bf16.mxu0 0
    %155 = vmatpush1.bf16.msra.mxu0 0
    %156 = vmatprep.subr.bf16.mxu0 0
    %157 = vmatpush1.bf16.msra.mxu0 0
    %158 = vmatprep.subr.bf16.mxu0 0
    %159 = vmatpush1.bf16.msra.mxu0 %v141
    %160 = vmatprep.subr.bf16.mxu0 0
    %161 = vmatpush1.bf16.msra.mxu0 %v140
    %162 = vmatprep.subr.bf16.mxu0 0
    %163 = vmatpush1.bf16.msra.mxu0 %v139
    %164 = vmatprep.subr.bf16.mxu0 0
    %165 = vmatpush1.bf16.msra.mxu0 %v138
    %166 = vmatprep.subr.bf16.mxu0 0
    %167 = vmatpush2.bf16.msra.mxu0 0
    %168 = vmatprep.subr.bf16.mxu0 0
    %169 = vmatpush2.bf16.msra.mxu0 0
    %170 = vmatprep.subr.bf16.mxu0 0
    %171 = vmatpush2.bf16.msra.mxu0 0
    %172 = vmatprep.subr.bf16.mxu0 0
    %173 = vmatpush2.bf16.msra.mxu0 0
    %174 = vmatprep.subr.bf16.mxu0 0
    %175 = vmatpush2.bf16.msra.mxu0 0
    %176 = vmatprep.subr.bf16.mxu0 0
    %177 = vmatpush2.bf16.msra.mxu0 0
    %178 = vmatprep.subr.bf16.mxu0 0
    %179 = vmatpush2.bf16.msra.mxu0 0
    %180 = vmatprep.subr.bf16.mxu0 0
    %181 = vmatpush2.bf16.msra.mxu0 0
    %182 = vmatprep.mubr.bf16.mxu0 0
    %183 = vmatmul.mubr.bf16.gmra.mxu0 %v148
    %v184 = vpop.f32.mrf.mxu0
    %v185 = vadd.f32 %v120, %v184
    %v186 = vpop.f32.mrf.mxu0
    %v187 = vpop.f32.mrf.mxu0
    %v188 = vpop.f32.mrf.mxu0
    %189 = vdwg.mxu0
    %v190 = vmax.f32 %v185, 0.0
    %v191 = vpack.c.bf16 %v190, %v190
    %v192 = vld [vmem:[%s5] sm:$0xf]
    %v193 = vld [vmem:[%s5 + $0x4] sm:$0xf]
    %v194 = vld [vmem:[%s5 + $0x8] sm:$0xf]
    %v195 = vld [vmem:[%s5 + $0xc] sm:$0xf]
    %v196 = vld [vmem:[%s6] sm:$0x1]
    %v198 = vlaneseq
    %v199 = vshrl.u32 %v198, 7
    %v200 = vsub.s32 0, %v199
    %v201 = vrot.slane %v196, %v200
    %v207 = vunpack.c.l.b16 %v192
    %v208 = vunpack.c.l.b16 %v193
    %v209 = vunpack.c.l.b16 %v194
    %v210 = vunpack.c.l.b16 %v195
    %v211 = vpack.c.b16 %v208, %v207
    %v212 = vpack.c.b16 %v210, %v209
    %v216 = vsel %vm61, %v191, 0
    %218 = vmatprep.subr.bf16.mxu0 0
    %219 = vmatpush1.bf16.msra.mxu0 0
    %220 = vmatprep.subr.bf16.mxu0 0
    %221 = vmatpush1.bf16.msra.mxu0 0
    %222 = vmatprep.subr.bf16.mxu0 0
    %223 = vmatpush1.bf16.msra.mxu0 0
    %224 = vmatprep.subr.bf16.mxu0 0
    %225 = vmatpush1.bf16.msra.mxu0 0
    %226 = vmatprep.subr.bf16.mxu0 0
    %227 = vmatpush1.bf16.msra.mxu0 0
    %228 = vmatprep.subr.bf16.mxu0 0
    %229 = vmatpush1.bf16.msra.mxu0 0
    %230 = vmatprep.subr.bf16.mxu0 0
    %231 = vmatpush1.bf16.msra.mxu0 %v212
    %232 = vmatprep.subr.bf16.mxu0 0
    %233 = vmatpush1.bf16.msra.mxu0 %v211
    %234 = vmatprep.subr.bf16.mxu0 0
    %235 = vmatpush2.bf16.msra.mxu0 0
    %236 = vmatprep.subr.bf16.mxu0 0
    %237 = vmatpush2.bf16.msra.mxu0 0
    %238 = vmatprep.subr.bf16.mxu0 0
    %239 = vmatpush2.bf16.msra.mxu0 0
    %240 = vmatprep.subr.bf16.mxu0 0
    %241 = vmatpush2.bf16.msra.mxu0 0
    %242 = vmatprep.subr.bf16.mxu0 0
    %243 = vmatpush2.bf16.msra.mxu0 0
    %244 = vmatprep.subr.bf16.mxu0 0
    %245 = vmatpush2.bf16.msra.mxu0 0
    %246 = vmatprep.subr.bf16.mxu0 0
    %247 = vmatpush2.bf16.msra.mxu0 0
    %248 = vmatprep.subr.bf16.mxu0 0
    %249 = vmatpush2.bf16.msra.mxu0 0
    %250 = vmatprep.mubr.bf16.mxu0 0
    %251 = vmatmul.mubr.bf16.gmra.mxu0 %v216
    %v252 = vpop.f32.mrf.mxu0
    %v253 = vadd.f32 %v201, %v252
    %v254 = vpop.f32.mrf.mxu0
    %v255 = vpop.f32.mrf.mxu0
    %v256 = vpop.f32.mrf.mxu0
    %257 = vdwg.mxu0
    %vm258 = vcmask 64512
    %259 = vst.msk [vmem:[#allocation2] sm:$0xff] %vm258, %v253
    %v260 = vld [vmem:[%s7] sm:$0xf]
    %v261 = vld [vmem:[%s7 + $0x4] sm:$0xf]
    %v262 = vld [vmem:[%s7 + $0x8] sm:$0xf]
    %v263 = vld [vmem:[%s7 + $0xc] sm:$0xf]
    %v264 = vld [vmem:[%s8] sm:$0x1]
    %v266 = vlaneseq
    %v267 = vshrl.u32 %v266, 7
    %v268 = vsub.s32 0, %v267
    %v269 = vrot.slane %v264, %v268
    %v275 = vunpack.c.l.b16 %v260
    %v276 = vunpack.c.l.b16 %v261
    %v277 = vunpack.c.l.b16 %v262
    %v278 = vunpack.c.l.b16 %v263
    %v279 = vpack.c.b16 %v276, %v275
    %v280 = vpack.c.b16 %v278, %v277
    %283 = vmatprep.subr.bf16.mxu0 0
    %284 = vmatpush1.bf16.msra.mxu0 0
    %285 = vmatprep.subr.bf16.mxu0 0
    %286 = vmatpush1.bf16.msra.mxu0 0
    %287 = vmatprep.subr.bf16.mxu0 0
    %288 = vmatpush1.bf16.msra.mxu0 0
    %289 = vmatprep.subr.bf16.mxu0 0
    %290 = vmatpush1.bf16.msra.mxu0 0
    %291 = vmatprep.subr.bf16.mxu0 0
    %292 = vmatpush1.bf16.msra.mxu0 0
    %293 = vmatprep.subr.bf16.mxu0 0
    %294 = vmatpush1.bf16.msra.mxu0 0
    %295 = vmatprep.subr.bf16.mxu0 0
    %296 = vmatpush1.bf16.msra.mxu0 %v280
    %297 = vmatprep.subr.bf16.mxu0 0
    %298 = vmatpush1.bf16.msra.mxu0 %v279
    %299 = vmatprep.subr.bf16.mxu0 0
    %300 = vmatpush2.bf16.msra.mxu0 0
    %301 = vmatprep.subr.bf16.mxu0 0
    %302 = vmatpush2.bf16.msra.mxu0 0
    %303 = vmatprep.subr.bf16.mxu0 0
    %304 = vmatpush2.bf16.msra.mxu0 0
    %305 = vmatprep.subr.bf16.mxu0 0
    %306 = vmatpush2.bf16.msra.mxu0 0
    %307 = vmatprep.subr.bf16.mxu0 0
    %308 = vmatpush2.bf16.msra.mxu0 0
    %309 = vmatprep.subr.bf16.mxu0 0
    %310 = vmatpush2.bf16.msra.mxu0 0
    %311 = vmatprep.subr.bf16.mxu0 0
    %312 = vmatpush2.bf16.msra.mxu0 0
    %313 = vmatprep.subr.bf16.mxu0 0
    %314 = vmatpush2.bf16.msra.mxu0 0
    %315 = vmatprep.mubr.bf16.mxu0 0
    %316 = vmatmul.mubr.bf16.gmra.mxu0 %v216
    %v317 = vpop.f32.mrf.mxu0
    %v318 = vadd.f32 %v269, %v317
    %v319 = vpop.f32.mrf.mxu0
    %v320 = vpop.f32.mrf.mxu0
    %v321 = vpop.f32.mrf.mxu0
    %322 = vdwg.mxu0
    %vm323 = vcmask 31744
    %324 = vst.msk [vmem:[%s10] sm:$0xff] %vm323, %v318
    // Predicated region
    $region38: #{tpu_custom_call.1} parent=1 // pred_check
      _
    $region39: #{tpu_custom_call.1} parent=1 // pred_check_branch
      %326 = sbr.rel (0) target = $region41
    $region40: #{tpu_custom_call.1} parent=1 // pred_region
      %s328 = ssub.s32 128, 128
      %329 = vsyncadd [#allocation3], %s328
      %s331 = sshll.u32 [#allocation2], 4
      %s332 = int_to_ptr.vmem [resolvable:$true] %s331
      %334 = dma.vmem_to_hbm [thread:$0]  %s332, 128, %s9, [#allocation3]
    $region41: #{tpu_custom_call.1} parent=1 // pred_fallthru
      _
    // Predicated region
    $region42: #{tpu_custom_call.1} parent=1 // pred_check
      _
    $region43: #{tpu_custom_call.1} parent=1 // pred_check_branch
      %336 = sbr.rel (0) target = $region45
    $region44: #{tpu_custom_call.1} parent=1 // pred_region
      _
    $region45: #{tpu_custom_call.1} parent=1 // pred_fallthru
      _
    // Predicated region
    $region46: #{tpu_custom_call.1} parent=1 // pred_check
      _
    $region47: #{tpu_custom_call.1} parent=1 // pred_check_branch
      %338 = sbr.rel (0) target = $region49
    $region48: #{tpu_custom_call.1} parent=1 // pred_region
      %339 = dma.done [#allocation3], 128
    $region49: #{tpu_custom_call.1} parent=1 // pred_fallthru
      _
    // Predicated region
    $region50: #{tpu_custom_call.1} parent=1 // pred_check
      _
    $region51: #{tpu_custom_call.1} parent=1 // pred_check_branch
      %341 = sbr.rel (0) target = $region53
    $region52: #{tpu_custom_call.1} parent=1 // pred_region
      _
    $region53: #{tpu_custom_call.1} parent=1 // pred_fallthru
      _
    %342 = vsyncpa [#allocation3], 1

</llo_original>
